<compile_context>
chip_gen: v7x
topology: tpu7x:2x2x1
jax: 0.10.0
libtpu: 0.0.40
codegen_flags: <defaults>
</compile_context>

<pallas_src>
import functools

import jax
import jax.numpy as jnp
from jax import lax
from jax.experimental import pallas as pl
from jax.experimental.pallas import tpu as pltpu


_OUT_BLOCK_BYTES_CAP = 8 * 1024 * 1024      # per output buffer (x2 double-buffered)
_ONEHOT_BYTES_CAP = 4 * 1024 * 1024         # (tm, V) f32 one-hot temporary
_VMEM_LIMIT_FLOOR = 16 * 1024 * 1024
_VMEM_LIMIT_CEIL = 48 * 1024 * 1024         # stays under v7x's 64 MiB physical VMEM


def _round_up(x, m):
    return (x + m - 1) // m * m


def _round_down_min(x, m):
    return max(m, (x // m) * m)


def _vmem_limit(estimate_bytes):
    return int(min(_VMEM_LIMIT_CEIL, max(_VMEM_LIMIT_FLOOR, 2 * estimate_bytes)))


# ---------------------------------------------------------------------------
# Small-table fast path: table resident in VMEM, one-hot gather on the MXU.
# ---------------------------------------------------------------------------

def _onehot_gather_kernel(ids_ref, tbl_ref, out_ref):
    """ids_ref: (tm, 1) int32; tbl_ref: (V, E) resident table; out_ref: (tm, E)."""
    tm = out_ref.shape[0]
    V = tbl_ref.shape[0]
    ids = ids_ref[...]                                             # (tm, 1) int32
    onehot = (ids == lax.broadcasted_iota(jnp.int32, (tm, V), 1))  # (tm, V) bool
    onehot = onehot.astype(tbl_ref.dtype)
    out_ref[...] = jnp.dot(
        onehot, tbl_ref[...], preferred_element_type=jnp.float32
    ).astype(out_ref.dtype)


def _small_table_gather(ids, emb_weight, tm):
    NT = ids.shape[0]
    V, E = emb_weight.shape
    itemsize = emb_weight.dtype.itemsize
    min_rows = 8 * max(1, 4 // itemsize)          # 8 for f32, 16 for bf16

    row_bytes = E * itemsize
    cap_out = _round_down_min(max(min_rows, _OUT_BLOCK_BYTES_CAP // row_bytes), min_rows)
    cap_oh = _round_down_min(max(min_rows, _ONEHOT_BYTES_CAP // (V * 4)), min_rows)
    tm_eff = min(tm, cap_out, cap_oh, _round_up(NT, min_rows))
    tm_eff = _round_down_min(tm_eff, min_rows)

    NT_pad = _round_up(NT, tm_eff)
    if NT_pad != NT:
        ids = jnp.pad(ids, (0, NT_pad - NT))      # padded slots read the zero row
    ids2d = ids.reshape(NT_pad, 1)

    table_bytes = V * E * itemsize
    est = 2 * tm_eff * row_bytes + 2 * table_bytes + tm_eff * V * 4 + 2 * tm_eff * 4

    return pl.pallas_call(
        _onehot_gather_kernel,
        out_shape=jax.ShapeDtypeStruct((NT_pad, E), emb_weight.dtype),
        grid_spec=pltpu.PrefetchScalarGridSpec(
            num_scalar_prefetch=0,
            grid=(NT_pad // tm_eff,),
            in_specs=[
                pl.BlockSpec((tm_eff, 1), lambda i: (i, 0)),   # ids block
                pl.BlockSpec((V, E), lambda i: (0, 0)),        # table, resident
            ],
            out_specs=pl.BlockSpec((tm_eff, E), lambda i: (i, 0)),
        ),
        compiler_params=pltpu.CompilerParams(
            dimension_semantics=("parallel",),
            vmem_limit_bytes=_vmem_limit(est),
        ),
    )(ids2d, emb_weight)


# ---------------------------------------------------------------------------
# Large-table path: HBM row-gather via per-row DMAs + single aggregate wait.
# ---------------------------------------------------------------------------

def _hbm_gather_kernel(ids_ref, emb_hbm, out_ref, sem, *, unroll):
    """Gather tm embedding rows from the HBM table into the (tm, E) output block.

    ids_ref : SMEM (NT_pad,) int32, scalar-prefetched, pre-clamped to [0, V).
    emb_hbm : (V, Eg) table left in HBM (pl.ANY) -- never resident in VMEM.
    out_ref : (tm, Eg) VMEM output block.
    sem     : single DMA-completion semaphore shared by all row copies.
    """
    tm = out_ref.shape[0]
    base = pl.program_id(0) * tm

    # Issue all tm row DMAs back-to-back (partially unrolled so the scalar /
    # vector-misc slots can push descriptors without per-iteration loop
    # overhead; all copies are in flight at once and signal the same sem).
    def _start(t, carry):
        tok = ids_ref[base + t]
        pltpu.make_async_copy(
            emb_hbm.at[pl.ds(tok, 1), :],   # (1, Eg) source row in HBM
            out_ref.at[pl.ds(t, 1), :],     # (1, Eg) destination row in VMEM
            sem,
        ).start()
        return carry

    lax.fori_loop(0, tm, _start, 0, unroll=unroll)

    # Single aggregate wait: the tm row copies together transfer exactly
    # tm * Eg * itemsize bytes onto `sem`; a descriptor covering the whole
    # output block waits for (and consumes) exactly that amount.  The source
    # ref of a wait descriptor only fixes the transfer size, so out_ref is
    # used for both ends (always shape-correct, never out of bounds).
    pltpu.make_async_copy(out_ref, out_ref, sem).wait()


def _hbm_row_gather(ids, emb_weight, tm):
    NT = ids.shape[0]
    V, E = emb_weight.shape
    orig_dtype = emb_weight.dtype
    itemsize = orig_dtype.itemsize

    # Pack sub-32-bit rows into uint32 so each row DMA lands as full 32-bit
    # sublane writes in the (8,128)-tiled VMEM destination (no partial-tile
    # read-modify-write for bf16/int8 tables).
    packed = itemsize < 4 and (E * itemsize) % 4 == 0
    if packed:
        ratio = 4 // itemsize
        gather_tbl = lax.bitcast_convert_type(
            emb_weight.reshape(V, E // ratio, ratio), jnp.uint32)
    else:
        gather_tbl = emb_weight
    Eg = gather_tbl.shape[1]
    g_itemsize = gather_tbl.dtype.itemsize
    min_rows = 8 * max(1, 4 // g_itemsize)

    row_bytes = Eg * g_itemsize
    cap_out = _round_down_min(max(min_rows, _OUT_BLOCK_BYTES_CAP // row_bytes), min_rows)
    tm_eff = min(tm, cap_out, _round_up(NT, min_rows))
    tm_eff = _round_down_min(tm_eff, min_rows)

    NT_pad = _round_up(NT, tm_eff)
    if NT_pad != NT:
        # Padding slots gather row 0 (wasted HBM reads only; sliced away later).
        ids = jnp.pad(ids, (0, NT_pad - NT))

    est = 2 * tm_eff * row_bytes
    kernel = functools.partial(_hbm_gather_kernel, unroll=min(8, tm_eff))

    out = pl.pallas_call(
        kernel,
        out_shape=jax.ShapeDtypeStruct((NT_pad, Eg), gather_tbl.dtype),
        grid_spec=pltpu.PrefetchScalarGridSpec(
            num_scalar_prefetch=1,                      # ids -> SMEM
            grid=(NT_pad // tm_eff,),
            in_specs=[
                pl.BlockSpec(memory_space=pl.ANY),      # table stays in HBM
            ],
            out_specs=pl.BlockSpec((tm_eff, Eg), lambda i, ids_ref: (i, 0)),
            scratch_shapes=[pltpu.SemaphoreType.DMA(())],
        ),
        compiler_params=pltpu.CompilerParams(
            dimension_semantics=("parallel",),          # disjoint output tiles
            vmem_limit_bytes=_vmem_limit(est),
        ),
    )(ids, gather_tbl)

    if packed:
        out = lax.bitcast_convert_type(out, orig_dtype).reshape(NT_pad, E)
    return out


# ---------------------------------------------------------------------------
# Public wrapper (dispatch) — forward pass of TokenEmbedding.
# ---------------------------------------------------------------------------

def token_embedding(x, emb_weight, *, tm=512,
                    small_table_bytes=4 * 1024 * 1024,
                    max_onehot_vocab=2048):
    """x: [B, S] int token ids; emb_weight: [V, E]; returns [B, S, E]."""
    B, S = x.shape
    V, E = emb_weight.shape
    NT = B * S

    # Clamp ids so every gather index is in-bounds (nn.Embedding raises on
    # OOB ids; we clamp instead).
    ids = jnp.clip(x.reshape(NT).astype(jnp.int32), 0, V - 1)

    table_bytes = V * E * emb_weight.dtype.itemsize
    if table_bytes <= small_table_bytes and V <= max_onehot_vocab:
        out_flat = _small_table_gather(ids, emb_weight, tm)
    else:
        out_flat = _hbm_row_gather(ids, emb_weight, tm)

    return out_flat[:NT].reshape(B, S, E)


if __name__ == "__main__":
    key = jax.random.PRNGKey(0)
    k_w1, k_x1, k_w3, k_x3 = jax.random.split(key, 4)

    # ---- Test 1: small-table fast path (VMEM-resident table, one-hot MXU gather)
    V1, E1, B1, S1 = 32, 128, 2, 8
    w1 = jax.random.normal(k_w1, (V1, E1), dtype=jnp.float32)
    w1 = w1.at[0].set(0.0)                         # padding_idx=0 row is zero
    x1 = jax.random.randint(k_x1, (B1, S1), 0, V1, dtype=jnp.int32)
    x1 = x1.at[0, 0].set(0).at[1, 3].set(0)        # force some padding tokens

    out1 = jax.block_until_ready(token_embedding(x1, w1))
    ref1 = w1[x1]
    assert out1.shape == (B1, S1, E1)
    assert jnp.allclose(out1, ref1, atol=1e-6), "small-table path mismatch"
    assert jnp.allclose(out1[0, 0], 0.0), "padding_idx row must be zero"

    # ---- Test 2: force the HBM row-gather path on the same f32 inputs
    out2 = jax.block_until_ready(token_embedding(x1, w1, small_table_bytes=0))
    assert jnp.allclose(out2, ref1, atol=1e-6), "HBM row-gather path mismatch"

    # ---- Test 3: HBM row-gather with a bf16 table (u32-packed row DMAs),
    #              ragged token count (exercises tail padding).
    V3, E3, B3, S3 = 64, 256, 2, 21
    w3 = jax.random.normal(k_w3, (V3, E3), dtype=jnp.float32).astype(jnp.bfloat16)
    w3 = w3.at[0].set(0)
    x3 = jax.random.randint(k_x3, (B3, S3), 0, V3, dtype=jnp.int32)
    x3 = x3.at[0, 5].set(0)

    out3 = jax.block_until_ready(token_embedding(x3, w3, small_table_bytes=0))
    ref3 = w3[x3]
    assert out3.shape == (B3, S3, E3) and out3.dtype == jnp.bfloat16
    assert jnp.allclose(out3.astype(jnp.float32), ref3.astype(jnp.float32)), \
        "bf16 packed row-gather mismatch"
    assert jnp.all(out3[0, 5].astype(jnp.float32) == 0.0), "padding row must be zero"

    print("KERNEL_OK")
</pallas_src>

<mosaic_0001>
module attributes {stable_mosaic.version = 11 : i64} {
  func.func @_onehot_gather_kernel(%arg0: i32, %arg1: memref<16x1xi32, #tpu.memory_space<vmem>>, %arg2: memref<32x128xf32, #tpu.memory_space<vmem>>, %arg3: memref<16x128xf32, #tpu.memory_space<vmem>>) attributes {dimension_semantics = [#tpu.dimension_semantics<parallel>], iteration_bounds = array<i64: 1>, scalar_prefetch = 0 : i64, scratch_operands = 0 : i64, tpu.core_type = #tpu.core_type<tc>, window_params = [{transform_indices = @transform_0, window_bounds = array<i64: 16, 1>}, {pipeline_mode = #tpu.pipeline_mode<synchronous>, transform_indices = @transform_1, window_bounds = array<i64: 32, 128>}, {transform_indices = @transform_2, window_bounds = array<i64: 16, 128>}]} {
    %c0 = arith.constant 0 : index
    %c0_0 = arith.constant 0 : index
    %0 = vector.load %arg1[%c0, %c0_0] : memref<16x1xi32, #tpu.memory_space<vmem>>, vector<16x1xi32>
    %1 = tpu.iota {dimensions = array<i32: 1>} : vector<16x32xi32>
    %2 = vector.broadcast %0 : vector<16x1xi32> to vector<16x32xi32>
    %3 = arith.cmpi eq, %2, %1 : vector<16x32xi32>
    %4 = arith.extui %3 : vector<16x32xi1> to vector<16x32xi32>
    %5 = arith.sitofp %4 : vector<16x32xi32> to vector<16x32xf32>
    %c0_1 = arith.constant 0 : index
    %c0_2 = arith.constant 0 : index
    %6 = vector.load %arg2[%c0_1, %c0_2] : memref<32x128xf32, #tpu.memory_space<vmem>>, vector<32x128xf32>
    %cst = arith.constant dense<0.000000e+00> : vector<16x128xf32>
    %7 = tpu.matmul %5, %6, %cst {dimension_numbers = #tpu.dot_dimension_numbers<[1], [0], [0], [1], [0, 0, 1, 1], [], []>} : vector<16x32xf32>, vector<32x128xf32>, vector<16x128xf32> -> vector<16x128xf32>
    %c0_3 = arith.constant 0 : index
    %c0_4 = arith.constant 0 : index
    %8 = vector.load %arg3[%c0_3, %c0_4] : memref<16x128xf32, #tpu.memory_space<vmem>>, vector<16x128xf32>
    tpu.vector_store %arg3[%c0_3, %c0_4], %7 {strides = array<i32>} : memref<16x128xf32, #tpu.memory_space<vmem>>, vector<16x128xf32>,
    return
  }
  func.func @transform_0(%arg0: i32) -> (i32, i32) {
    %c0_i32 = arith.constant 0 : i32
    %c0_i32_0 = arith.constant 0 : i32
    return %arg0, %c0_i32 : i32, i32
  }
  func.func @transform_1(%arg0: i32) -> (i32, i32) {
    %c0_i32 = arith.constant 0 : i32
    %c0_i32_0 = arith.constant 0 : i32
    %c0_i32_1 = arith.constant 0 : i32
    return %c0_i32, %c0_i32_0 : i32, i32
  }
  func.func @transform_2(%arg0: i32) -> (i32, i32) {
    %c0_i32 = arith.constant 0 : i32
    %c0_i32_0 = arith.constant 0 : i32
    return %arg0, %c0_i32 : i32, i32
  }
}

</mosaic_0001>

<llo_original>
// kernel: tpu_custom_call.1
$region0: #{tpu_custom_call.1}
  #allocation0 [shape = 'u32[]', space=smem, size = 0x4, offset = 0x4, fixed_abs, tag = 'smem constant byte address 0x4 - core index']
  #allocation1 [shape = 'u32[144,128]{1,0:T(1,128)}', space=vmem, size = 0x12000, scoped, tag = 'internal scratch']
  %s0 = inlined_call_operand.vmem [shape: s32[16,1], index: 0, kind: input, shape index: {}]
  %s1 = inlined_call_operand.hbm [shape: f32[32,128], index: 1, kind: input, shape index: {}]
  %s2 = inlined_call_operand.hbm [shape: f32[16,128], index: 2, kind: output, shape index: {}]
  %s3 = sld [smem:[#allocation0]]
  $region22: #{tpu_custom_call.1} parent=0
    _
  %s5 = ssub.s32 1, %s3
  %s6 = scalar_select 0, %s5, %s3
  $region1: #{tpu_custom_call.1} parent=0
    #allocation2 [shape = 'u8[16384]{0}', space=vmem, size = 0x4000, scoped, tag = 'input window, operand 1, single buffered']
    #allocation3 [shape = 's32[1]{0}', space=sflag, size = 0x4, scoped, tag = 'scoped memory for tpu_custom_call.1']
    #allocation4 [shape = 's32[1]{0}', space=sflag, size = 0x4, scoped, tag = 'scoped memory for tpu_custom_call.1']
    #allocation5 [shape = 'u8[8192]{0}', space=vmem, size = 0x2000, scoped, tag = 'output window, operand 0, single buffered']
    %7 = vsyncpa [#allocation3], 0
    %8 = vsyncpa [#allocation4], 0
    // Predicated region
    $region2: #{tpu_custom_call.1} parent=1 // pred_check
      _
    $region3: #{tpu_custom_call.1} parent=1 // pred_check_branch
      %10 = sbr.rel (0) target = $region5
    $region4: #{tpu_custom_call.1} parent=1 // pred_region
      _
    $region5: #{tpu_custom_call.1} parent=1 // pred_fallthru
      _
    // Predicated region
    $region6: #{tpu_custom_call.1} parent=1 // pred_check
      _
    $region7: #{tpu_custom_call.1} parent=1 // pred_check_branch
      %12 = sbr.rel (0) target = $region9
    $region8: #{tpu_custom_call.1} parent=1 // pred_region
      %s14 = ssub.s32 512, 512
      %15 = vsyncadd [#allocation3], %s14
      %s16 = sshll.u32 [#allocation2], 4
      %s17 = int_to_ptr.vmem [resolvable:$true] %s16
      %22 = dma.hbm_to_vmem [thread:$0]  %s1, 512, %s17, [#allocation3], 128, 128, 8
    $region9: #{tpu_custom_call.1} parent=1 // pred_fallthru
      _
    // Predicated region
    $region10: #{tpu_custom_call.1} parent=1 // pred_check
      _
    $region11: #{tpu_custom_call.1} parent=1 // pred_check_branch
      %24 = sbr.rel (0) target = $region13
    $region12: #{tpu_custom_call.1} parent=1 // pred_region
      %25 = dma.done [#allocation3], 512
    $region13: #{tpu_custom_call.1} parent=1 // pred_fallthru
      _
    %v26 = vld [vmem:[%s0] sm:$0xff]
    %v27 = vld [vmem:[%s0 + $0x8] sm:$0xff]
    %v28 = vlaneseq
    %v29 = vand.u32 %v28, 127
    %30 = vset.pattern.permute.xlu0 0
    %31 = vperm.xlu0 %30, %v26
    %v32 = vpop.permute.xlu0 %31
    %33 = vset.pattern.permute.xlu0 0
    %34 = vperm.xlu0 %33, %v27
    %v35 = vpop.permute.xlu0 %34
    %vm36 = vcmp.eq.s32.totalorder %v32, %v29
    %vm37 = vcmp.eq.s32.totalorder %v35, %v29
    %v38 = vsel %vm36, 1, 0
    %v39 = vsel %vm37, 1, 0
    %v40 = vcvt.s32.f32 %v38
    %v41 = vcvt.s32.f32 %v39
    %v42 = vld [vmem:[#allocation2] sm:$0xff]
    %v43 = vld [vmem:[#allocation2 + $0x8] sm:$0xff]
    %v44 = vld [vmem:[#allocation2 + $0x10] sm:$0xff]
    %v45 = vld [vmem:[#allocation2 + $0x18] sm:$0xff]
    %vm46 = vcmask 261120
    %v48 = vsel %vm46, %v40, 0
    %v51 = vsel %vm46, %v41, 0
    %53 = vmatprep.subr.mxu0 0.0
    %54 = vmatpush1.msra.mxu0 %v42
    %55 = vmatprep.subr.mxu0 0.0
    %56 = vmatpush1.msra.mxu0 %v43
    %57 = vmatprep.subr.mxu0 0.0
    %58 = vmatpush1.msra.mxu0 %v44
    %59 = vmatprep.subr.mxu0 0.0
    %60 = vmatpush1.msra.mxu0 %v45
    %61 = vmatprep.subr.mxu0 0.0
    %62 = vmatpush1.msra.mxu0 0.0
    %63 = vmatprep.subr.mxu0 0.0
    %64 = vmatpush1.msra.mxu0 0.0
    %65 = vmatprep.subr.mxu0 0.0
    %66 = vmatpush1.msra.mxu0 0.0
    %67 = vmatprep.subr.mxu0 0.0
    %68 = vmatpush1.msra.mxu0 0.0
    %69 = vmatprep.subr.mxu0 0.0
    %70 = vmatpush1.msra.mxu0 0.0
    %71 = vmatprep.subr.mxu0 0.0
    %72 = vmatpush1.msra.mxu0 0.0
    %73 = vmatprep.subr.mxu0 0.0
    %74 = vmatpush1.msra.mxu0 0.0
    %75 = vmatprep.subr.mxu0 0.0
    %76 = vmatpush1.msra.mxu0 0.0
    %77 = vmatprep.subr.mxu0 0.0
    %78 = vmatpush1.msra.mxu0 0.0
    %79 = vmatprep.subr.mxu0 0.0
    %80 = vmatpush1.msra.mxu0 0.0
    %81 = vmatprep.subr.mxu0 0.0
    %82 = vmatpush1.msra.mxu0 0.0
    %83 = vmatprep.subr.mxu0 0.0
    %84 = vmatpush1.msra.mxu0 0.0
    %85 = vmatprep.subr.mxu0 0.0
    %86 = vmatpush1.msra.mxu0 0.0
    %87 = vmatprep.subr.mxu0 0.0
    %88 = vmatpush1.msra.mxu0 0.0
    %89 = vmatprep.subr.mxu0 0.0
    %90 = vmatpush1.msra.mxu0 0.0
    %91 = vmatprep.subr.mxu0 0.0
    %92 = vmatpush1.msra.mxu0 0.0
    %93 = vmatprep.subr.mxu0 0.0
    %94 = vmatpush1.msra.mxu0 0.0
    %95 = vmatprep.subr.mxu0 0.0
    %96 = vmatpush1.msra.mxu0 0.0
    %97 = vmatprep.subr.mxu0 0.0
    %98 = vmatpush1.msra.mxu0 0.0
    %99 = vmatprep.subr.mxu0 0.0
    %100 = vmatpush1.msra.mxu0 0.0
    %101 = vmatprep.subr.mxu0 0.0
    %102 = vmatpush1.msra.mxu0 0.0
    %103 = vmatprep.subr.mxu0 0.0
    %104 = vmatpush1.msra.mxu0 0.0
    %105 = vmatprep.subr.mxu0 0.0
    %106 = vmatpush1.msra.mxu0 0.0
    %107 = vmatprep.subr.mxu0 0.0
    %108 = vmatpush1.msra.mxu0 0.0
    %109 = vmatprep.subr.mxu0 0.0
    %110 = vmatpush1.msra.mxu0 0.0
    %111 = vmatprep.subr.mxu0 0.0
    %112 = vmatpush1.msra.mxu0 0.0
    %113 = vmatprep.subr.mxu0 0.0
    %114 = vmatpush1.msra.mxu0 0.0
    %115 = vmatprep.subr.mxu0 0.0
    %116 = vmatpush1.msra.mxu0 0.0
    %117 = vmatprep.mubr.f32.mxu0 0.0
    %118 = vmatmul.mubr.f32.gmra.mrb[0].mxu0 %v48
    %v119 = vpop.f32.mrb[0].mxu0
    %v120 = vadd.f32 0.0, %v119
    %v121 = vpop.f32.mrb[0].mxu0
    %122 = vmatprep.mubr.f32.mxu0 0.0
    %123 = vmatmul.mubr.f32.gmra.mrb[0].mxu0 %v51
    %v124 = vpop.f32.mrb[0].mxu0
    %v125 = vadd.f32 0.0, %v124
    %v126 = vpop.f32.mrb[0].mxu0
    %127 = vdwg.mxu0
    %128 = vst [vmem:[#allocation5] sm:$0xff] %v120
    %129 = vst [vmem:[#allocation5 + $0x8] sm:$0xff] %v125
    // Predicated region
    $region14: #{tpu_custom_call.1} parent=1 // pred_check
      _
    $region15: #{tpu_custom_call.1} parent=1 // pred_check_branch
      %131 = sbr.rel (0) target = $region17
    $region16: #{tpu_custom_call.1} parent=1 // pred_region
      %s133 = ssub.s32 256, 256
      %134 = vsyncadd [#allocation4], %s133
      %s135 = sshll.u32 [#allocation5], 4
      %s136 = int_to_ptr.vmem [resolvable:$true] %s135
      %141 = dma.vmem_to_hbm [thread:$0]  %s136, 256, %s2, [#allocation4], 128, 128, 8
    $region17: #{tpu_custom_call.1} parent=1 // pred_fallthru
      _
    // Predicated region
    $region18: #{tpu_custom_call.1} parent=1 // pred_check
      _
    $region19: #{tpu_custom_call.1} parent=1 // pred_check_branch
      %143 = sbr.rel (0) target = $region21
    $region20: #{tpu_custom_call.1} parent=1 // pred_region
      %144 = dma.done [#allocation4], 256
    $region21: #{tpu_custom_call.1} parent=1 // pred_fallthru
      _
    %145 = vsyncpa [#allocation3], 1
    %146 = vsyncpa [#allocation4], 1

</llo_original>
